<compile_context>
chip_gen: v6e
topology: v6e:2x2x1
jax: 0.10.0
libtpu: 0.0.40
codegen_flags: <defaults>
</compile_context>

<pallas_src>
import functools

import numpy as np

import jax
import jax.numpy as jnp
from jax.experimental import pallas as pl
from jax.experimental.pallas import tpu as pltpu

_LANES = 128


# ----------------------------------------------------------------------------
# log1p(z) on (0, 1] as a near-minimax polynomial (degree-9 Chebyshev-node
# interpolation; max abs error ~2e-7, far below the 1e-5 validation tolerance).
# Evaluating it on the VPU removes one of the two EUP pushes per vreg.
# ----------------------------------------------------------------------------
def _log1p_poly_coeffs(degree: int = 9):
    k = np.arange(degree + 1)
    # Chebyshev nodes mapped to [0, 1].
    nodes = 0.5 - 0.5 * np.cos((2.0 * k + 1.0) * np.pi / (2.0 * (degree + 1)))
    coeffs = np.polynomial.polynomial.polyfit(nodes, np.log1p(nodes), degree)
    return tuple(float(c) for c in coeffs)        # lowest power first


_LOG1P_COEFFS = _log1p_poly_coeffs(9)


def _poly_log1p(z):
    c = _LOG1P_COEFFS
    acc = jnp.float32(c[-1]) * z + jnp.float32(c[-2])
    for coef in c[-3::-1]:                        # Horner, all VALU
        acc = acc * z + jnp.float32(coef)
    return acc


def _bce_with_logits_f32(x, label, use_poly):
    """Numerically stable BCE-with-logits vs a constant label, f32 accumulate.

    Matches torch.nn.BCEWithLogitsLoss per-element:
        max(x, 0) - x * y + log(1 + exp(-|x|))
    """
    x = x.astype(jnp.float32)
    z = jnp.exp(-jnp.abs(x))                      # single EUP push per vreg
    log_term = _poly_log1p(z) if use_poly else jnp.log1p(z)
    return jnp.maximum(x, 0.0) - x * jnp.float32(label) + log_term


# ----------------------------------------------------------------------------
# Kernel: one (tile_rows, 128) tile -> one (8, 128) f32 block of partial sums.
# ----------------------------------------------------------------------------
def _gan_loss_partial_kernel(x_ref, out_ref, *, label, tile_rows,
                             valid_rows_last, use_poly):
    last = pl.num_programs(0) - 1

    def partial_sums(valid_rows):
        loss = _bce_with_logits_f32(x_ref[...], label, use_poly)
        if valid_rows is not None:
            # Partial last block: rows >= valid_rows hold unspecified data
            # (Pallas pads the block); zero them before accumulating.
            row = jax.lax.broadcasted_iota(jnp.int32, loss.shape, 0)
            loss = jnp.where(row < valid_rows, loss, 0.0)
        # (tile_rows, 128) -> (tile_rows//8, 8, 128); reducing the leading dim is
        # pure VALU vreg adds (no cross-lane XLU work), and the (8, 128) result
        # is stored with a full-lane unmasked vst.
        return jnp.sum(loss.reshape(tile_rows // 8, 8, _LANES), axis=0)

    if valid_rows_last == tile_rows:
        out_ref[...] = partial_sums(None)
    else:
        @pl.when(pl.program_id(0) != last)
        def _():
            out_ref[...] = partial_sums(None)

        @pl.when(pl.program_id(0) == last)
        def _():
            out_ref[...] = partial_sums(valid_rows_last)


# ----------------------------------------------------------------------------
# Host-side helpers.
# ----------------------------------------------------------------------------
def _sublane_multiple(dtype) -> int:
    """Row-count multiple respecting sub-32-bit sublane packing."""
    bits = jnp.dtype(dtype).itemsize * 8
    return max(8, 256 // bits)    # 8 for 32-bit, 16 for 16-bit, 32 for 8-bit


def _choose_tile_rows(rows: int, sub: int, max_tile_rows: int):
    """Pick (tile_rows, num_blocks).

    Blocks are <= max_tile_rows rows; target >= 4 blocks when the input is big
    enough (>= 2 per TensorCore on v7x); prefer an even block count.
    """
    max_tile = max(sub, (int(max_tile_rows) // sub) * sub)
    base_target = max(4, pl.cdiv(rows, max_tile))
    best = None
    for target in range(base_target, base_target + 4):
        tile = ((rows // target) // sub) * sub
        if tile <= 0:
            tile = sub
        tile = min(tile, max_tile)
        blocks = pl.cdiv(rows, tile)
        cand = (blocks % 2, blocks, -tile)        # even first, then fewer blocks
        if best is None or cand < best:
            best = cand
    _, blocks, neg_tile = best
    return -neg_tile, blocks


def gan_loss(inp, real: bool, label_smoothing: float = 1.0, *,
             max_tile_rows: int = 2048,
             min_pallas_bytes: int = 256 * 1024,
             use_log1p_poly: bool = True):
    """Pallas equivalent of GANLoss.forward(inp, real) -> scalar mean BCE loss."""
    label = float(label_smoothing) if real else 1.0 - float(label_smoothing)
    n = int(inp.size)
    if n == 0:
        # torch's BCEWithLogitsLoss mean-reduction over an empty tensor is NaN.
        return jnp.float32(jnp.nan)

    x_flat = jnp.ravel(inp)                       # free reshape, original dtype
    itemsize = jnp.dtype(x_flat.dtype).itemsize
    sub = _sublane_multiple(x_flat.dtype)
    rows = n // _LANES
    tail = n - rows * _LANES                      # 0..127 elements

    # Small inputs: a single fused XLA reduce beats kernel launch overhead.
    if rows < sub or n * itemsize < min_pallas_bytes:
        return jnp.sum(_bce_with_logits_f32(x_flat, label, False)) / jnp.float32(n)

    tile_rows, num_blocks = _choose_tile_rows(rows, sub, max_tile_rows)
    valid_rows_last = rows - (num_blocks - 1) * tile_rows
    n_main = rows * _LANES

    x_main = x_flat if tail == 0 else jax.lax.slice(x_flat, (0,), (n_main,))
    x2d = x_main.reshape(rows, _LANES)

    poly_deg = len(_LOG1P_COEFFS) - 1
    flops_per_elem = 8 + (2 * poly_deg if use_log1p_poly else 2)
    cost = pl.CostEstimate(
        flops=flops_per_elem * n_main,
        transcendentals=(1 if use_log1p_poly else 2) * n_main,
        bytes_accessed=n_main * itemsize + num_blocks * 8 * _LANES * 4,
    )

    kernel = functools.partial(
        _gan_loss_partial_kernel, label=label, tile_rows=tile_rows,
        valid_rows_last=valid_rows_last, use_poly=bool(use_log1p_poly))

    partials = pl.pallas_call(
        kernel,
        out_shape=jax.ShapeDtypeStruct((num_blocks * 8, _LANES), jnp.float32),
        grid_spec=pltpu.PrefetchScalarGridSpec(
            num_scalar_prefetch=0,
            grid=(num_blocks,),
            in_specs=[pl.BlockSpec((tile_rows, _LANES), lambda i: (i, 0))],
            out_specs=pl.BlockSpec((8, _LANES), lambda i: (i, 0)),
        ),
        compiler_params=pltpu.CompilerParams(
            dimension_semantics=("parallel",),
        ),
        cost_estimate=cost,
    )(x2d)

    total = jnp.sum(partials)
    if tail:
        # < 128 leftover elements (rare): trivial plain-JAX tail.
        total = total + jnp.sum(_bce_with_logits_f32(x_flat[n_main:], label, False))
    return total / jnp.float32(n)


# ----------------------------------------------------------------------------
# Validation.
# ----------------------------------------------------------------------------
def _reference_gan_loss(x, real: bool, label_smoothing: float):
    label = label_smoothing if real else 1.0 - label_smoothing
    xf = x.astype(jnp.float32)
    return jnp.mean(jnp.maximum(xf, 0.0) - xf * jnp.float32(label)
                    + jnp.log1p(jnp.exp(-jnp.abs(xf))))


if __name__ == "__main__":
    key = jax.random.PRNGKey(0)
    smoothing = 0.9

    # 1) Typical small discriminator-logit shape (NCHW), f32.  Force the Pallas
    #    path (min_pallas_bytes=0) so the kernel itself is exercised at this size.
    x = jax.random.normal(key, (2, 4, 16, 16), dtype=jnp.float32)
    out_real = gan_loss(x, True, smoothing, min_pallas_bytes=0)
    out_fake = gan_loss(x, False, smoothing, min_pallas_bytes=0)
    jax.block_until_ready((out_real, out_fake))
    ref_real = _reference_gan_loss(x, True, smoothing)
    ref_fake = _reference_gan_loss(x, False, smoothing)
    assert jnp.allclose(out_real, ref_real, atol=1e-5, rtol=1e-5), (out_real, ref_real)
    assert jnp.allclose(out_fake, ref_fake, atol=1e-5, rtol=1e-5), (out_fake, ref_fake)

    # Exact-log1p kernel variant (EUP log instead of the VPU polynomial).
    out_exact = gan_loss(x, True, smoothing, min_pallas_bytes=0, use_log1p_poly=False)
    jax.block_until_ready(out_exact)
    assert jnp.allclose(out_exact, ref_real, atol=1e-5, rtol=1e-5), (out_exact, ref_real)

    # 2) Awkward size: exercises the masked partial last block + <128-elem tail.
    y = jax.random.normal(jax.random.fold_in(key, 1), (3, 5, 7, 11), dtype=jnp.float32)
    out_y = gan_loss(y, True, smoothing, min_pallas_bytes=0)
    jax.block_until_ready(out_y)
    ref_y = _reference_gan_loss(y, True, smoothing)
    assert jnp.allclose(out_y, ref_y, atol=1e-5, rtol=1e-5), (out_y, ref_y)

    # 3) bf16 logits: kernel reads bf16 directly (half the HBM bytes), f32 accum.
    z = jax.random.normal(jax.random.fold_in(key, 2), (2, 4, 16, 16), dtype=jnp.bfloat16)
    out_z = gan_loss(z, False, smoothing, min_pallas_bytes=0)
    jax.block_until_ready(out_z)
    ref_z = _reference_gan_loss(z, False, smoothing)
    assert jnp.allclose(out_z, ref_z, atol=1e-4, rtol=1e-4), (out_z, ref_z)

    # 4) Large enough to take the kernel path under the default byte threshold
    #    (multiple blocks -> pipelining + >=2 blocks per TensorCore on v7x).
    w = jax.random.normal(jax.random.fold_in(key, 3), (2, 8, 64, 64), dtype=jnp.float32)
    out_w = gan_loss(w, True, smoothing)
    jax.block_until_ready(out_w)
    ref_w = _reference_gan_loss(w, True, smoothing)
    assert jnp.allclose(out_w, ref_w, atol=1e-5, rtol=1e-5), (out_w, ref_w)

    # 5) Tiny input stays on the fused-XLA bypass path.
    t = jax.random.normal(jax.random.fold_in(key, 4), (2, 1, 4, 4), dtype=jnp.float32)
    out_t = gan_loss(t, False, smoothing)
    jax.block_until_ready(out_t)
    ref_t = _reference_gan_loss(t, False, smoothing)
    assert jnp.allclose(out_t, ref_t, atol=1e-5, rtol=1e-5), (out_t, ref_t)

    print("KERNEL_OK")
</pallas_src>

<mosaic_0001>
module attributes {stable_mosaic.version = 11 : i64} {
  func.func @_gan_loss_partial_kernel(%arg0: i32, %arg1: memref<8x128xf32, #tpu.memory_space<vmem>>, %arg2: memref<8x128xf32, #tpu.memory_space<vmem>>) attributes {dimension_semantics = [#tpu.dimension_semantics<parallel>], iteration_bounds = array<i64: 2>, scalar_prefetch = 0 : i64, scratch_operands = 0 : i64, tpu.core_type = #tpu.core_type<tc>, window_params = [{transform_indices = @transform_0, window_bounds = array<i64: 8, 128>}, {transform_indices = @transform_1, window_bounds = array<i64: 8, 128>}]} {
    %c0 = arith.constant 0 : index
    %c0_0 = arith.constant 0 : index
    %0 = vector.load %arg1[%c0, %c0_0] : memref<8x128xf32, #tpu.memory_space<vmem>>, vector<8x128xf32>
    %1 = math.absf %0 : vector<8x128xf32>
    %cst = arith.constant 0.000000e+00 : f32
    %2 = vector.broadcast %cst : f32 to vector<8x128xf32>
    %3 = arith.subf %2, %1 : vector<8x128xf32>
    %4 = math.exp %3 : vector<8x128xf32>
    %cst_1 = arith.constant 0.00366224209 : f32
    %5 = vector.broadcast %cst_1 : f32 to vector<8x128xf32>
    %6 = arith.mulf %5, %4 : vector<8x128xf32>
    %cst_2 = arith.constant -0.0226280075 : f32
    %7 = vector.broadcast %cst_2 : f32 to vector<8x128xf32>
    %8 = arith.addf %6, %7 : vector<8x128xf32>
    %9 = arith.mulf %8, %4 : vector<8x128xf32>
    %cst_3 = arith.constant 0.0657355264 : f32
    %10 = vector.broadcast %cst_3 : f32 to vector<8x128xf32>
    %11 = arith.addf %9, %10 : vector<8x128xf32>
    %12 = arith.mulf %11, %4 : vector<8x128xf32>
    %cst_4 = arith.constant -0.124471948 : f32
    %13 = vector.broadcast %cst_4 : f32 to vector<8x128xf32>
    %14 = arith.addf %12, %13 : vector<8x128xf32>
    %15 = arith.mulf %14, %4 : vector<8x128xf32>
    %cst_5 = arith.constant 0.184213862 : f32
    %16 = vector.broadcast %cst_5 : f32 to vector<8x128xf32>
    %17 = arith.addf %15, %16 : vector<8x128xf32>
    %18 = arith.mulf %17, %4 : vector<8x128xf32>
    %cst_6 = arith.constant -0.246189684 : f32
    %19 = vector.broadcast %cst_6 : f32 to vector<8x128xf32>
    %20 = arith.addf %18, %19 : vector<8x128xf32>
    %21 = arith.mulf %20, %4 : vector<8x128xf32>
    %cst_7 = arith.constant 0.332785338 : f32
    %22 = vector.broadcast %cst_7 : f32 to vector<8x128xf32>
    %23 = arith.addf %21, %22 : vector<8x128xf32>
    %24 = arith.mulf %23, %4 : vector<8x128xf32>
    %cst_8 = arith.constant -0.499958932 : f32
    %25 = vector.broadcast %cst_8 : f32 to vector<8x128xf32>
    %26 = arith.addf %24, %25 : vector<8x128xf32>
    %27 = arith.mulf %26, %4 : vector<8x128xf32>
    %cst_9 = arith.constant 0.999998807 : f32
    %28 = vector.broadcast %cst_9 : f32 to vector<8x128xf32>
    %29 = arith.addf %27, %28 : vector<8x128xf32>
    %30 = arith.mulf %29, %4 : vector<8x128xf32>
    %cst_10 = arith.constant 6.05784756E-9 : f32
    %31 = vector.broadcast %cst_10 : f32 to vector<8x128xf32>
    %32 = arith.addf %30, %31 : vector<8x128xf32>
    %cst_11 = arith.constant 0.000000e+00 : f32
    %33 = vector.broadcast %cst_11 : f32 to vector<8x128xf32>
    %34 = arith.maximumf %0, %33 : vector<8x128xf32>
    %cst_12 = arith.constant 0.899999976 : f32
    %35 = vector.broadcast %cst_12 : f32 to vector<8x128xf32>
    %36 = arith.mulf %0, %35 : vector<8x128xf32>
    %37 = arith.subf %34, %36 : vector<8x128xf32>
    %38 = arith.addf %37, %32 : vector<8x128xf32>
    %39 = vector.shape_cast %38 : vector<8x128xf32> to vector<1x8x128xf32>
    %cst_13 = arith.constant dense<0.000000e+00> : vector<8x128xf32>
    %40 = vector.multi_reduction <add>, %39, %cst_13 [0] : vector<1x8x128xf32> to vector<8x128xf32>
    %c0_14 = arith.constant 0 : index
    %c0_15 = arith.constant 0 : index
    %41 = vector.load %arg2[%c0_14, %c0_15] : memref<8x128xf32, #tpu.memory_space<vmem>>, vector<8x128xf32>
    tpu.vector_store %arg2[%c0_14, %c0_15], %40 {strides = array<i32>} : memref<8x128xf32, #tpu.memory_space<vmem>>, vector<8x128xf32>,
    return
  }
  func.func @transform_0(%arg0: i32) -> (i32, i32) {
    %c0_i32 = arith.constant 0 : i32
    %c0_i32_0 = arith.constant 0 : i32
    return %arg0, %c0_i32 : i32, i32
  }
  func.func @transform_1(%arg0: i32) -> (i32, i32) {
    %c0_i32 = arith.constant 0 : i32
    %c0_i32_0 = arith.constant 0 : i32
    return %arg0, %c0_i32 : i32, i32
  }
}

</mosaic_0001>

<llo_original>
// kernel: tpu_custom_call.1
$region0: #{tpu_custom_call.1}
  #allocation0 [shape = 'u32[]', space=smem, size = 0x4, offset = 0x4, fixed_abs, tag = 'smem constant byte address 0x4 - core index']
  #allocation1 [shape = 'u32[144,128]{1,0:T(1,128)}', space=vmem, size = 0x12000, scoped, tag = 'internal scratch']
  %s0 = inlined_call_operand.hbm [shape: f32[16,128], index: 0, kind: input, shape index: {}]
  %s1 = inlined_call_operand.hbm [shape: f32[16,128], index: 1, kind: output, shape index: {}]
  %s2 = sld [smem:[#allocation0]]
  $region41: #{tpu_custom_call.1} parent=0
    _
  %s4 = ssub.s32 1, %s2
  %s5 = scalar_select 0, %s4, %s2
  $region1: #{tpu_custom_call.1} parent=0
    #allocation2 [shape = 'u8[8192]{0}', space=vmem, size = 0x2000, scoped, tag = 'input window, operand 0']
    #allocation3 [shape = 's32[2]{0}', space=sflag, size = 0x8, scoped, tag = 'scoped memory for tpu_custom_call.1']
    #allocation4 [shape = 's32[2]{0}', space=sflag, size = 0x8, scoped, tag = 'scoped memory for tpu_custom_call.1']
    #allocation5 [shape = 'u8[8192]{0}', space=vmem, size = 0x2000, scoped, tag = 'output window, operand 0']
    %6 = vsyncpa [#allocation3], 0
    %s7 = scalar_lea.sflag [#allocation3], 1
    %8 = vsyncpa %s7, 0
    %9 = vsyncpa [#allocation4], 0
    %s10 = scalar_lea.sflag [#allocation4], 1
    %11 = vsyncpa %s10, 0
    loop: start=0, step=1, limit=4
    $region2: #{tpu_custom_call.1} parent=1 // loop_pre_header
      _
    $region3: #{tpu_custom_call.1} parent=1 // loop_header
      %s13 = sphi 0, %s17
      %p14 = scmp.ge.s32.totalorder %s13, 4
      %s23 = sphi 0, %s25
      %s26 = sphi 0, %s23
      %s27 = sphi 0, %s26
      %s43 = sphi 0, %s27
      %s49 = sphi 0, %s51
      %s52 = sphi 0, %s49
      %s53 = sphi 0, %s52
      %s69 = sphi 0, %s53
    $region4: #{tpu_custom_call.1} parent=1 // loop_header_branch
      %16 = sbr.rel (%p14) target = $region8
    $region5: #{tpu_custom_call.1} parent=1 // loop_body
      %s18 = ssub.s32 %s13, 1
      %s19 = ssub.s32 %s13, 2
      %s20 = sadd.s32 %s13, 1
      %s21 = ssub.s32 %s13, %s20
      %p22 = scmp.eq.s32.totalorder %s21, 0
      %s24 = sadd.s32 %s23, 1
      %s25 = scalar_select %p22, %s23, %s24
      %p28 = pneg %p22
      %p29 = scmp.eq.s32.totalorder %s13, 1
      %p30 = por %p28, %p29
      %p31 = scmp.ne.s32.totalorder %s23, %s26
      %p32 = scmp.eq.s32.totalorder %s13, 0
      %p33 = por %p31, %p32
      %p34 = scmp.ne.s32.totalorder %s23, %s26
      %p35 = scmp.eq.s32.totalorder %s18, 1
      %p36 = por %p34, %p35
      %p37 = scmp.ne.s32.totalorder %s26, %s27
      %p38 = scmp.eq.s32.totalorder %s18, 0
      %p39 = por %p37, %p38
      %p40 = scmp.ne.s32.totalorder %s26, %s27
      %p41 = scmp.eq.s32.totalorder %s19, 1
      %p42 = por %p40, %p41
      %p44 = scmp.ne.s32.totalorder %s27, %s43
      %p45 = scmp.eq.s32.totalorder %s19, 0
      %p46 = por %p44, %p45
      %s47 = ssub.s32 %s13, %s20
      %p48 = scmp.eq.s32.totalorder %s47, 0
      %s50 = sadd.s32 %s49, 1
      %s51 = scalar_select %p48, %s49, %s50
      %p54 = pneg %p48
      %p55 = scmp.eq.s32.totalorder %s13, 1
      %p56 = por %p54, %p55
      %p57 = scmp.ne.s32.totalorder %s49, %s52
      %p58 = scmp.eq.s32.totalorder %s13, 0
      %p59 = por %p57, %p58
      %p60 = scmp.ne.s32.totalorder %s49, %s52
      %p61 = scmp.eq.s32.totalorder %s18, 1
      %p62 = por %p60, %p61
      %p63 = scmp.ne.s32.totalorder %s52, %s53
      %p64 = scmp.eq.s32.totalorder %s18, 0
      %p65 = por %p63, %p64
      %p66 = scmp.ne.s32.totalorder %s52, %s53
      %p67 = scmp.eq.s32.totalorder %s19, 1
      %p68 = por %p66, %p67
      %p70 = scmp.ne.s32.totalorder %s53, %s69
      %p71 = scmp.eq.s32.totalorder %s19, 0
      %p72 = por %p70, %p71
      %p73 = scmp.le.s32.totalorder 1, %s13
      %p74 = scmp.lt.s32.totalorder %s13, 3
      %p75 = pnand %p73, %p74
      %p76 = pneg %p75
      // Predicated region
      $region9: #{tpu_custom_call.1} parent=5 // pred_check
        _
      $region10: #{tpu_custom_call.1} parent=5 // pred_check_branch
        %78 = sbr.rel (%p75) target = $region12
      $region11: #{tpu_custom_call.1} parent=5 // pred_region
        %s79 = ssub.s32 %s13, 1
      $region12: #{tpu_custom_call.1} parent=5 // pred_fallthru
        _
      %p80 = scmp.lt.s32.totalorder %s13, 2
      // Predicated region
      $region13: #{tpu_custom_call.1} parent=5 // pred_check
        %p81 = pneg %p80
      $region14: #{tpu_custom_call.1} parent=5 // pred_check_branch
        %83 = sbr.rel (%p81) target = $region16
      $region15: #{tpu_custom_call.1} parent=5 // pred_region
        // Predicated region
        $region17: #{tpu_custom_call.1} parent=15 // pred_check
          %p84 = pneg %p33
        $region18: #{tpu_custom_call.1} parent=15 // pred_check_branch
          %86 = sbr.rel (%p84) target = $region20
        $region19: #{tpu_custom_call.1} parent=15 // pred_region
          %s87 = sand.u32 %s23, 1
          %s88 = scalar_lea.sflag [#allocation3], %s87
          %s89 = sand.u32 %s23, 1
          %s90 = smul.addr %s89, 8
          %s91 = scalar_lea.vmem [#allocation2], %s90
          %s93 = ssub.s32 128, 128
          %94 = vsyncadd %s88, %s93
          %s95 = smul.addr %s13, 128
          %s96 = scalar_lea.hbm %s0, %s95
          %s98 = sshll.u32 %s91, 4
          %s99 = int_to_ptr.vmem [resolvable:$true] %s98
          %101 = dma.hbm_to_vmem [thread:$0]  %s96, 128, %s99, %s88
        $region20: #{tpu_custom_call.1} parent=15 // pred_fallthru
          _
      $region16: #{tpu_custom_call.1} parent=5 // pred_fallthru
        _
      %p102 = scmp.le.s32.totalorder 1, %s13
      %p103 = scmp.lt.s32.totalorder %s13, 3
      %p104 = pnand %p102, %p103
      %p105 = pneg %p104
      // Predicated region
      $region21: #{tpu_custom_call.1} parent=5 // pred_check
        _
      $region22: #{tpu_custom_call.1} parent=5 // pred_check_branch
        %107 = sbr.rel (%p104) target = $region24
      $region23: #{tpu_custom_call.1} parent=5 // pred_region
        %s108 = ssub.s32 %s13, 1
        %s109 = sand.u32 %s26, 1
        %s110 = scalar_lea.sflag [#allocation3], %s109
        %s111 = sand.u32 %s26, 1
        %s112 = smul.addr %s111, 8
        %s113 = scalar_lea.vmem [#allocation2], %s112
        // Predicated region
        $region25: #{tpu_custom_call.1} parent=23 // pred_check
          %p114 = pneg %p39
        $region26: #{tpu_custom_call.1} parent=23 // pred_check_branch
          %116 = sbr.rel (%p114) target = $region28
        $region27: #{tpu_custom_call.1} parent=23 // pred_region
          %117 = dma.done %s110, 128
        $region28: #{tpu_custom_call.1} parent=23 // pred_fallthru
          _
        %s118 = sand.u32 %s26, 1
        %s119 = scalar_lea.sflag [#allocation3], %s118
        %s120 = sand.u32 %s26, 1
        %s121 = smul.addr %s120, 8
        %s122 = scalar_lea.vmem [#allocation2], %s121
        %p123 = pneg %p39
        %p124 = pneg %p36
        %p125 = pneg %p65
        %p126 = pneg %p62
        %s127 = sand.u32 %s52, 1
        %s128 = scalar_lea.sflag [#allocation4], %s127
        %s129 = sand.u32 %s52, 1
        %s130 = smul.addr %s129, 8
        %s131 = scalar_lea.vmem [#allocation5], %s130
        %v132 = vld [vmem:[%s113] sm:$0xff]
        %v133 = vand.u32 2147483647, %v132
        %v134 = vsub.f32 0.0, %v133
        %v135 = vmul.f32 %v134, 1.442695
        %v136 = vpow.pop %v135
        %v137 = vmul.f32 %v136, 0.003662242
        %v138 = vadd.f32 %v137, -0.022628007
        %v139 = vmul.f32 %v138, %v136
        %v140 = vadd.f32 %v139, 0.06573553
        %v141 = vmul.f32 %v140, %v136
        %v142 = vadd.f32 %v141, -0.12447195
        %v143 = vmul.f32 %v142, %v136
        %v144 = vadd.f32 %v143, 0.18421386
        %v145 = vmul.f32 %v144, %v136
        %v146 = vadd.f32 %v145, -0.24618968
        %v147 = vmul.f32 %v146, %v136
        %v148 = vadd.f32 %v147, 0.33278534
        %v149 = vmul.f32 %v148, %v136
        %v150 = vadd.f32 %v149, -0.49995893
        %v151 = vmul.f32 %v150, %v136
        %v152 = vadd.f32 %v151, 0.9999988
        %v153 = vmul.f32 %v152, %v136
        %v154 = vadd.f32 %v153, 6.0578476e-09
        %v155 = vmax.f32 %v132, 0.0
        %v156 = vmul.f32 %v132, 0.9
        %v157 = vsub.f32 %v155, %v156
        %v158 = vadd.f32 %v157, %v154
        %v159 = vadd.f32 %v158, 0.0
        %160 = vst [vmem:[%s131] sm:$0xff] %v159
        %s161 = sand.u32 %s52, 1
        %s162 = scalar_lea.sflag [#allocation4], %s161
        %s163 = sand.u32 %s52, 1
        %s164 = smul.addr %s163, 8
        %s165 = scalar_lea.vmem [#allocation5], %s164
        // Predicated region
        $region29: #{tpu_custom_call.1} parent=23 // pred_check
          %p166 = pneg %p62
        $region30: #{tpu_custom_call.1} parent=23 // pred_check_branch
          %168 = sbr.rel (%p166) target = $region32
        $region31: #{tpu_custom_call.1} parent=23 // pred_region
          %s170 = ssub.s32 128, 128
          %171 = vsyncadd %s162, %s170
          %s172 = smul.addr %s18, 128
          %s173 = scalar_lea.hbm %s1, %s172
          %s175 = sshll.u32 %s165, 4
          %s176 = int_to_ptr.vmem [resolvable:$true] %s175
          %178 = dma.vmem_to_hbm [thread:$0]  %s176, 128, %s173, %s162
        $region32: #{tpu_custom_call.1} parent=23 // pred_fallthru
          _
      $region24: #{tpu_custom_call.1} parent=5 // pred_fallthru
        _
      %p179 = scmp.le.s32.totalorder 2, %s13
      // Predicated region
      $region33: #{tpu_custom_call.1} parent=5 // pred_check
        %p180 = pneg %p179
      $region34: #{tpu_custom_call.1} parent=5 // pred_check_branch
        %182 = sbr.rel (%p180) target = $region36
      $region35: #{tpu_custom_call.1} parent=5 // pred_region
        %s183 = ssub.s32 %s13, 2
        // Predicated region
        $region37: #{tpu_custom_call.1} parent=35 // pred_check
          %p184 = pneg %p68
        $region38: #{tpu_custom_call.1} parent=35 // pred_check_branch
          %186 = sbr.rel (%p184) target = $region40
        $region39: #{tpu_custom_call.1} parent=35 // pred_region
          %s187 = sand.u32 %s53, 1
          %s188 = scalar_lea.sflag [#allocation4], %s187
          %s189 = sand.u32 %s53, 1
          %s190 = smul.addr %s189, 8
          %s191 = scalar_lea.vmem [#allocation5], %s190
          %192 = dma.done %s188, 128
        $region40: #{tpu_custom_call.1} parent=35 // pred_fallthru
          _
      $region36: #{tpu_custom_call.1} parent=5 // pred_fallthru
        _
    $region6: #{tpu_custom_call.1} parent=1 // loop_footer
      %s17 = sadd.s32 1, %s13
    $region7: #{tpu_custom_call.1} parent=1 // loop_footer_branch
      %12 = sbr.rel target = $region3
    $region8: #{tpu_custom_call.1} parent=1 // loop_exit
      _
    %193 = vsyncpa [#allocation3], 1
    %s194 = scalar_lea.sflag [#allocation3], 1
    %195 = vsyncpa %s194, 1
    %196 = vsyncpa [#allocation4], 1
    %s197 = scalar_lea.sflag [#allocation4], 1
    %198 = vsyncpa %s197, 1

</llo_original>
